<compile_context>
chip_gen: v7x
topology: tpu7x:2x2x1
jax: 0.10.0
libtpu: 0.0.40
codegen_flags: <defaults>
</compile_context>

<pallas_src>
import jax
import jax.numpy as jnp
from jax.experimental import pallas as pl
from jax.experimental.pallas import tpu as pltpu


def bn_eval_kernel(scale_ref, bias_ref, x_ref, o_ref):
    # scale_ref/bias_ref: VMEM (row_tile, 1) columns (lane-broadcast).
    # x_ref/o_ref:        VMEM (row_tile, H*W) lane-dense tiles.
    o_ref[...] = x_ref[...] * scale_ref[...] + bias_ref[...]


def bn_eval_mnist(x, scale, bias):
    """Per-channel affine (eval BatchNorm): scale * x + bias over NCHW."""
    N, C, H, W = x.shape
    rows = N * C
    cols = H * W

    # Lane-dense 2D view: row index = n*C + c, columns = flattened H*W plane.
    x2 = x.reshape(rows, cols)

    # Per-row broadcast columns (row n*C + c gets scale[c] / bias[c]).
    scale_rows = jnp.tile(scale.astype(x.dtype), N).reshape(rows, 1)
    bias_rows = jnp.tile(bias.astype(x.dtype), N).reshape(rows, 1)

    # Row tiling: a single full block at MNIST size; for larger inputs chunk
    # rows in multiples of 8 while keeping the last dim full (lane-dense),
    # budgeted conservatively so double-buffered tiles fit v7x's VMEM.
    bytes_per_row = cols * x2.dtype.itemsize
    max_rows_per_tile = max(8, (8 * 1024 * 1024) // max(bytes_per_row, 1))
    if rows <= max_rows_per_tile or rows % 8 != 0:
        row_tile = rows
    else:
        row_tile = rows
        for cand in range(min(rows, max_rows_per_tile), 7, -1):
            if rows % cand == 0 and cand % 8 == 0:
                row_tile = cand
                break

    grid = (rows // row_tile,)

    out2 = pl.pallas_call(
        bn_eval_kernel,
        out_shape=jax.ShapeDtypeStruct((rows, cols), x.dtype),
        grid=grid,
        in_specs=[
            pl.BlockSpec((row_tile, 1), lambda i: (i, 0)),      # scale column
            pl.BlockSpec((row_tile, 1), lambda i: (i, 0)),      # bias column
            pl.BlockSpec((row_tile, cols), lambda i: (i, 0)),   # x tile
        ],
        out_specs=pl.BlockSpec((row_tile, cols), lambda i: (i, 0)),
        compiler_params=pltpu.CompilerParams(
            dimension_semantics=("parallel",),
            vmem_limit_bytes=64 << 20,
        ),
    )(scale_rows, bias_rows, x2)

    return out2.reshape(N, C, H, W)


if __name__ == "__main__":
    key = jax.random.PRNGKey(0)
    kx, ks, kb = jax.random.split(key, 3)

    N, C, H, W = 2, 4, 16, 16
    x = jax.random.normal(kx, (N, C, H, W), dtype=jnp.float32)
    # Deterministic "BN" parameters (would come from running stats + gamma/beta).
    scale = jax.random.uniform(ks, (C,), dtype=jnp.float32, minval=0.5, maxval=1.5)
    bias = jax.random.normal(kb, (C,), dtype=jnp.float32)

    out = bn_eval_mnist(x, scale, bias)
    out = jax.block_until_ready(out)

    # Reference (plain JAX, mirrors the PyTorch broadcast semantics).
    ref = scale.reshape(1, C, 1, 1) * x + bias.reshape(1, C, 1, 1)
    assert out.shape == (N, C, H, W)
    assert jnp.allclose(out, ref, atol=1e-6, rtol=1e-6)

    print("KERNEL_OK")
</pallas_src>

<mosaic_0001>
module attributes {stable_mosaic.version = 11 : i64} {
  func.func @bn_eval_kernel(%arg0: i32, %arg1: memref<8x1xf32, #tpu.memory_space<vmem>>, %arg2: memref<8x1xf32, #tpu.memory_space<vmem>>, %arg3: memref<8x256xf32, #tpu.memory_space<vmem>>, %arg4: memref<8x256xf32, #tpu.memory_space<vmem>>) attributes {dimension_semantics = [#tpu.dimension_semantics<parallel>], iteration_bounds = array<i64: 1>, scalar_prefetch = 0 : i64, scratch_operands = 0 : i64, tpu.core_type = #tpu.core_type<tc>, window_params = [{transform_indices = @transform_0, window_bounds = array<i64: 8, 1>}, {transform_indices = @transform_1, window_bounds = array<i64: 8, 1>}, {transform_indices = @transform_2, window_bounds = array<i64: 8, 256>}, {transform_indices = @transform_3, window_bounds = array<i64: 8, 256>}]} {
    %c0 = arith.constant 0 : index
    %c0_0 = arith.constant 0 : index
    %0 = vector.load %arg3[%c0, %c0_0] : memref<8x256xf32, #tpu.memory_space<vmem>>, vector<8x256xf32>
    %c0_1 = arith.constant 0 : index
    %c0_2 = arith.constant 0 : index
    %1 = vector.load %arg1[%c0_1, %c0_2] : memref<8x1xf32, #tpu.memory_space<vmem>>, vector<8x1xf32>
    %2 = vector.broadcast %1 : vector<8x1xf32> to vector<8x256xf32>
    %3 = arith.mulf %0, %2 : vector<8x256xf32>
    %c0_3 = arith.constant 0 : index
    %c0_4 = arith.constant 0 : index
    %4 = vector.load %arg2[%c0_3, %c0_4] : memref<8x1xf32, #tpu.memory_space<vmem>>, vector<8x1xf32>
    %5 = vector.broadcast %4 : vector<8x1xf32> to vector<8x256xf32>
    %6 = arith.addf %3, %5 : vector<8x256xf32>
    %c0_5 = arith.constant 0 : index
    %c0_6 = arith.constant 0 : index
    %7 = vector.load %arg4[%c0_5, %c0_6] : memref<8x256xf32, #tpu.memory_space<vmem>>, vector<8x256xf32>
    tpu.vector_store %arg4[%c0_5, %c0_6], %6 {strides = array<i32>} : memref<8x256xf32, #tpu.memory_space<vmem>>, vector<8x256xf32>,
    return
  }
  func.func @transform_0(%arg0: i32) -> (i32, i32) {
    %c0_i32 = arith.constant 0 : i32
    %c0_i32_0 = arith.constant 0 : i32
    return %arg0, %c0_i32 : i32, i32
  }
  func.func @transform_1(%arg0: i32) -> (i32, i32) {
    %c0_i32 = arith.constant 0 : i32
    %c0_i32_0 = arith.constant 0 : i32
    return %arg0, %c0_i32 : i32, i32
  }
  func.func @transform_2(%arg0: i32) -> (i32, i32) {
    %c0_i32 = arith.constant 0 : i32
    %c0_i32_0 = arith.constant 0 : i32
    return %arg0, %c0_i32 : i32, i32
  }
  func.func @transform_3(%arg0: i32) -> (i32, i32) {
    %c0_i32 = arith.constant 0 : i32
    %c0_i32_0 = arith.constant 0 : i32
    return %arg0, %c0_i32 : i32, i32
  }
}

</mosaic_0001>

<llo_original>
// kernel: tpu_custom_call.1
$region0: #{tpu_custom_call.1}
  #allocation0 [shape = 'u32[]', space=smem, size = 0x4, offset = 0x4, fixed_abs, tag = 'smem constant byte address 0x4 - core index']
  #allocation1 [shape = 'u32[144,128]{1,0:T(1,128)}', space=vmem, size = 0x12000, scoped, tag = 'internal scratch']
  %s0 = inlined_call_operand.hbm [shape: f32[8,1], index: 0, kind: input, shape index: {}]
  %s1 = inlined_call_operand.hbm [shape: f32[8,1], index: 1, kind: input, shape index: {}]
  %s2 = inlined_call_operand.hbm [shape: f32[8,256], index: 2, kind: input, shape index: {}]
  %s3 = inlined_call_operand.hbm [shape: f32[8,256], index: 3, kind: output, shape index: {}]
  %s4 = sld [smem:[#allocation0]]
  $region34: #{tpu_custom_call.1} parent=0
    _
  %s6 = ssub.s32 1, %s4
  %s7 = scalar_select 0, %s6, %s4
  $region1: #{tpu_custom_call.1} parent=0
    #allocation2 [shape = 'u8[4096]{0}', space=vmem, size = 0x1000, scoped, tag = 'input window, operand 0, single buffered']
    #allocation3 [shape = 's32[1]{0}', space=sflag, size = 0x4, scoped, tag = 'scoped memory for tpu_custom_call.1']
    #allocation4 [shape = 's32[1]{0}', space=sflag, size = 0x4, scoped, tag = 'scoped memory for tpu_custom_call.1']
    #allocation5 [shape = 'u8[4096]{0}', space=vmem, size = 0x1000, scoped, tag = 'input window, operand 1, single buffered']
    #allocation6 [shape = 's32[1]{0}', space=sflag, size = 0x4, scoped, tag = 'scoped memory for tpu_custom_call.1']
    #allocation7 [shape = 'u8[8192]{0}', space=vmem, size = 0x2000, scoped, tag = 'input window, operand 2, single buffered']
    #allocation8 [shape = 'u8[8192]{0}', space=vmem, size = 0x2000, scoped, tag = 'output window, operand 0, single buffered']
    %8 = vsyncpa [#allocation3], 0
    %9 = vsyncpa [#allocation6], 0
    %10 = vsyncpa [#allocation4], 0
    // Predicated region
    $region2: #{tpu_custom_call.1} parent=1 // pred_check
      _
    $region3: #{tpu_custom_call.1} parent=1 // pred_check_branch
      %12 = sbr.rel (0) target = $region5
    $region4: #{tpu_custom_call.1} parent=1 // pred_region
      %s14 = ssub.s32 128, 128
      %15 = vsyncadd [#allocation3], %s14
      %s17 = sshll.u32 [#allocation2], 4
      %s18 = int_to_ptr.vmem [resolvable:$true] %s17
      %20 = dma.hbm_to_vmem [thread:$0]  %s0, 128, %s18, [#allocation3]
    $region5: #{tpu_custom_call.1} parent=1 // pred_fallthru
      _
    // Predicated region
    $region6: #{tpu_custom_call.1} parent=1 // pred_check
      _
    $region7: #{tpu_custom_call.1} parent=1 // pred_check_branch
      %22 = sbr.rel (0) target = $region9
    $region8: #{tpu_custom_call.1} parent=1 // pred_region
      %s24 = ssub.s32 128, 128
      %25 = vsyncadd [#allocation6], %s24
      %s27 = sshll.u32 [#allocation5], 4
      %s28 = int_to_ptr.vmem [resolvable:$true] %s27
      %30 = dma.hbm_to_vmem [thread:$0]  %s1, 128, %s28, [#allocation6]
    $region9: #{tpu_custom_call.1} parent=1 // pred_fallthru
      _
    // Predicated region
    $region10: #{tpu_custom_call.1} parent=1 // pred_check
      _
    $region11: #{tpu_custom_call.1} parent=1 // pred_check_branch
      %32 = sbr.rel (0) target = $region13
    $region12: #{tpu_custom_call.1} parent=1 // pred_region
      %s34 = ssub.s32 256, 256
      %35 = vsyncadd [#allocation6], %s34
      %s37 = sshll.u32 [#allocation7], 4
      %s38 = int_to_ptr.vmem [resolvable:$true] %s37
      %40 = dma.hbm_to_vmem [thread:$0]  %s2, 256, %s38, [#allocation6]
    $region13: #{tpu_custom_call.1} parent=1 // pred_fallthru
      _
    // Predicated region
    $region14: #{tpu_custom_call.1} parent=1 // pred_check
      _
    $region15: #{tpu_custom_call.1} parent=1 // pred_check_branch
      %42 = sbr.rel (0) target = $region17
    $region16: #{tpu_custom_call.1} parent=1 // pred_region
      %43 = dma.done [#allocation3], 128
    $region17: #{tpu_custom_call.1} parent=1 // pred_fallthru
      _
    // Predicated region
    $region18: #{tpu_custom_call.1} parent=1 // pred_check
      _
    $region19: #{tpu_custom_call.1} parent=1 // pred_check_branch
      %45 = sbr.rel (0) target = $region21
    $region20: #{tpu_custom_call.1} parent=1 // pred_region
      %46 = dma.done [#allocation6], 128
    $region21: #{tpu_custom_call.1} parent=1 // pred_fallthru
      _
    // Predicated region
    $region22: #{tpu_custom_call.1} parent=1 // pred_check
      _
    $region23: #{tpu_custom_call.1} parent=1 // pred_check_branch
      %48 = sbr.rel (0) target = $region25
    $region24: #{tpu_custom_call.1} parent=1 // pred_region
      %49 = dma.done [#allocation6], 256
    $region25: #{tpu_custom_call.1} parent=1 // pred_fallthru
      _
    %v50 = vld [vmem:[#allocation7] sm:$0xff]
    %v51 = vld [vmem:[#allocation7 + $0x8] sm:$0xff]
    %v52 = vld [vmem:[#allocation2] sm:$0xff]
    %54 = vset.pattern.permute.xlu0 0
    %55 = vperm.xlu0 %54, %v52
    %v56 = vpop.permute.xlu0 %55
    %v58 = vmul.f32 %v50, %v56
    %v59 = vmul.f32 %v51, %v56
    %v60 = vld [vmem:[#allocation5] sm:$0xff]
    %62 = vset.pattern.permute.xlu0 0
    %63 = vperm.xlu0 %62, %v60
    %v64 = vpop.permute.xlu0 %63
    %v66 = vadd.f32 %v58, %v64
    %v67 = vadd.f32 %v59, %v64
    %68 = vst [vmem:[#allocation8] sm:$0xff] %v66
    %69 = vst [vmem:[#allocation8 + $0x8] sm:$0xff] %v67
    // Predicated region
    $region26: #{tpu_custom_call.1} parent=1 // pred_check
      _
    $region27: #{tpu_custom_call.1} parent=1 // pred_check_branch
      %71 = sbr.rel (0) target = $region29
    $region28: #{tpu_custom_call.1} parent=1 // pred_region
      %s73 = ssub.s32 256, 256
      %74 = vsyncadd [#allocation4], %s73
      %s76 = sshll.u32 [#allocation8], 4
      %s77 = int_to_ptr.vmem [resolvable:$true] %s76
      %79 = dma.vmem_to_hbm [thread:$0]  %s77, 256, %s3, [#allocation4]
    $region29: #{tpu_custom_call.1} parent=1 // pred_fallthru
      _
    // Predicated region
    $region30: #{tpu_custom_call.1} parent=1 // pred_check
      _
    $region31: #{tpu_custom_call.1} parent=1 // pred_check_branch
      %81 = sbr.rel (0) target = $region33
    $region32: #{tpu_custom_call.1} parent=1 // pred_region
      %82 = dma.done [#allocation4], 256
    $region33: #{tpu_custom_call.1} parent=1 // pred_fallthru
      _
    %83 = vsyncpa [#allocation3], 1
    %84 = vsyncpa [#allocation6], 1
    %85 = vsyncpa [#allocation4], 1

</llo_original>
